<compile_context>
chip_gen: v7x
topology: tpu7x:2x2x1
jax: 0.10.0
libtpu: 0.0.40
codegen_flags: <defaults>
</compile_context>

<pallas_src>
import functools

import jax
import jax.numpy as jnp
from jax.experimental import pallas as pl
from jax.experimental.pallas import tpu as pltpu

_LANE = 128
_SUBLANE_BY_ITEMSIZE = {4: 8, 2: 16, 1: 32}
_VMEM_BUDGET = 32 * 1024 * 1024  # conservative: fits v5e/v6e scoped + v7x (64 MiB phys)


def _round_up(v: int, m: int) -> int:
    return (v + m - 1) // m * m


def _choose_tile(dim_aligned: int, max_tile: int, align: int) -> int:
    """Largest multiple of `align` <= max_tile minimizing pad waste on dim_aligned."""
    if dim_aligned <= max_tile:
        return dim_aligned
    best_t, best_waste = align, None
    t = align
    while t <= max_tile:
        waste = (-dim_aligned) % t
        if best_waste is None or waste < best_waste or (waste == best_waste and t > best_t):
            best_t, best_waste = t, waste
        t += align
    return best_t


# ---------------------------------------------------------------------------
# Kernels
# ---------------------------------------------------------------------------

def _linear_kernel_single_k(x_ref, w_ref, b_ref, o_ref):
    # x_ref: (tm, D_pad)  w_ref: (D_pad, tn)  b_ref: (1, tn)  o_ref: (tm, tn)
    o_ref[...] = (
        jnp.dot(x_ref[...], w_ref[...], preferred_element_type=jnp.float32)
        + b_ref[...]
    ).astype(o_ref.dtype)


def _linear_kernel_k_tiled(x_ref, w_ref, b_ref, o_ref, acc_ref):
    # x_ref: (tm, tk)  w_ref: (tk, tn)  b_ref: (1, tn)  o_ref: (tm, tn)
    # acc_ref: f32 (tm, tn) scratch.  Only used when num_programs(2) >= 2.
    k = pl.program_id(2)
    nk = pl.num_programs(2)
    partial = jnp.dot(x_ref[...], w_ref[...], preferred_element_type=jnp.float32)

    @pl.when(k == 0)
    def _init():
        acc_ref[...] = partial

    @pl.when(jnp.logical_and(k > 0, k < nk - 1))
    def _accumulate():
        acc_ref[...] += partial

    @pl.when(k == nk - 1)
    def _finalize():
        # Fuse the last partial product + bias into the writeback: saves one
        # full (tm, tn) f32 accumulator store + reload per output tile.
        o_ref[...] = (acc_ref[...] + partial + b_ref[...]).astype(o_ref.dtype)


# ---------------------------------------------------------------------------
# Host-side wrappers
# ---------------------------------------------------------------------------

def prepare_classifier_params(weight: jax.Array, bias: jax.Array, *,
                              compute_dtype=None):
    """One-time parameter prep (persistent across all forward calls).

    Pads the torch-layout (C, D) weight to lane-aligned (C_pad, D_pad), transposes
    it to MXU-native (D_pad, C_pad), and optionally casts to a compute dtype
    (e.g. jnp.bfloat16).  The bias is padded to (1, C_pad) in f32.
    """
    C, D = weight.shape
    compute_dtype = compute_dtype or weight.dtype
    C_pad = _round_up(C, _LANE)
    D_pad = _round_up(D, _LANE)
    w_t = jnp.pad(weight, ((0, C_pad - C), (0, D_pad - D))).T.astype(compute_dtype)
    b_p = jnp.pad(bias.astype(jnp.float32), (0, C_pad - C)).reshape(1, C_pad)
    return w_t, b_p


@functools.partial(jax.jit, static_argnames=("out_features",))
def classifier_forward(x: jax.Array, weight_t: jax.Array, bias: jax.Array, *,
                       out_features: int) -> jax.Array:
    """Pallas equivalent of Classifier.forward (torch.nn.Linear).

    Args:
        x:         (N, D) input activations.
        weight_t:  (D_pad, C_pad) pre-padded, pre-transposed weight from
                   `prepare_classifier_params` (persistent parameter).
        bias:      (1, C_pad) pre-padded f32 bias from `prepare_classifier_params`.
        out_features: C, the un-padded number of output logits.

    Returns:
        (N, C) logits, same dtype as x.
    """
    N, D = x.shape
    D_pad, C_pad = weight_t.shape
    assert D <= D_pad and out_features <= C_pad, (D, D_pad, out_features, C_pad)

    compute_dtype = weight_t.dtype
    in_sz = jnp.dtype(compute_dtype).itemsize
    out_dtype = x.dtype
    out_sz = jnp.dtype(out_dtype).itemsize
    sub = _SUBLANE_BY_ITEMSIZE.get(in_sz, 8)

    # ---- tile selection (static Python, runs at trace time) ----
    N_al = _round_up(N, sub)
    tm = N_al if N_al <= 512 else _choose_tile(N_al, 512, sub)
    tn = C_pad if C_pad <= 512 else _choose_tile(C_pad, 512, _LANE)

    def vmem_est(tm_, tn_, tk_, k_tiled_):
        b = 2 * (tm_ * tk_ + tk_ * tn_) * in_sz        # double-buffered x, W tiles
        b += 2 * tn_ * 4                               # double-buffered bias tile
        b += 2 * tm_ * tn_ * out_sz                    # double-buffered output tile
        if k_tiled_:
            b += tm_ * tn_ * 4                         # f32 accumulator scratch
        return b

    if vmem_est(tm, tn, D_pad, False) <= _VMEM_BUDGET:
        tk = D_pad                                      # collapse K grid: no acc scratch
    else:
        tk = _choose_tile(D_pad, 1024, _LANE)
        while vmem_est(tm, tn, tk, tk < D_pad) > _VMEM_BUDGET:
            if tk > _LANE:
                tk = _choose_tile(D_pad, max(_LANE, tk // 2), _LANE)
            elif tn > _LANE:
                tn = _choose_tile(C_pad, max(_LANE, tn // 2), _LANE)
            elif tm > sub:
                tm = _choose_tile(N_al, max(sub, tm // 2), sub)
            else:
                break

    N_pad = _round_up(N_al, tm)
    grid_m = N_pad // tm
    grid_n = C_pad // tn         # tn always divides C_pad (waste-0 pick, 128 | C_pad)
    grid_k = D_pad // tk         # tk always divides D_pad
    k_tiled = grid_k > 1

    # Only x is padded per call (weight/bias were padded once, persistently).
    x_p = jnp.pad(x, ((0, N_pad - N), (0, D_pad - D)))
    if x_p.dtype != compute_dtype:
        x_p = x_p.astype(compute_dtype)

    est = vmem_est(tm, tn, tk, k_tiled)
    vmem_limit = int(min(max(est * 3 // 2, 16 * 1024 * 1024), 48 * 1024 * 1024))

    cost = pl.CostEstimate(
        flops=2 * N_pad * D_pad * C_pad,
        transcendentals=0,
        bytes_accessed=(
            N_pad * D_pad * in_sz * grid_n     # x re-read once per C block
            + D_pad * C_pad * in_sz * grid_m   # W re-read once per N block
            + C_pad * 4 * grid_m               # bias
            + N_pad * C_pad * out_sz           # output written once
        ),
    )

    if not k_tiled:
        grid = (grid_m, grid_n)
        kernel = _linear_kernel_single_k
        in_specs = [
            pl.BlockSpec((tm, tk), lambda i, j: (i, 0)),   # x tile (full K)
            pl.BlockSpec((tk, tn), lambda i, j: (0, j)),   # W tile, MXU-native (K, C)
            pl.BlockSpec((1, tn), lambda i, j: (0, j)),    # bias tile
        ]
        out_specs = pl.BlockSpec((tm, tn), lambda i, j: (i, j))
        scratch = []
        semantics = ("parallel", "parallel")
    else:
        grid = (grid_m, grid_n, grid_k)
        kernel = _linear_kernel_k_tiled
        in_specs = [
            pl.BlockSpec((tm, tk), lambda i, j, k: (i, k)),
            pl.BlockSpec((tk, tn), lambda i, j, k: (k, j)),
            pl.BlockSpec((1, tn), lambda i, j, k: (0, j)),
        ]
        out_specs = pl.BlockSpec((tm, tn), lambda i, j, k: (i, j))
        scratch = [pltpu.VMEM((tm, tn), jnp.float32)]
        semantics = ("parallel", "parallel", "arbitrary")

    out_p = pl.pallas_call(
        kernel,
        out_shape=jax.ShapeDtypeStruct((N_pad, C_pad), out_dtype),
        grid_spec=pltpu.PrefetchScalarGridSpec(
            num_scalar_prefetch=0,
            grid=grid,
            in_specs=in_specs,
            out_specs=out_specs,
            scratch_shapes=scratch,
        ),
        compiler_params=pltpu.CompilerParams(
            dimension_semantics=semantics,
            vmem_limit_bytes=vmem_limit),
        cost_estimate=cost,
    )(x_p, weight_t, bias)

    return out_p[:N, :out_features]


if __name__ == "__main__":
    key = jax.random.PRNGKey(0)
    k1, k2, k3, k4, k5, k6 = jax.random.split(key, 6)

    # --- binary head: input_dim=32, num_classes=2 -> out_features = 1 ---
    N, D, num_classes = 8, 32, 2
    C = num_classes if num_classes > 2 else 1
    x = jax.random.normal(k1, (N, D), dtype=jnp.float32)
    # The module's __init__ zeros the weights; use non-zero deterministic values
    # so the matmul path is actually exercised.
    weight = jax.random.normal(k2, (C, D), dtype=jnp.float32) * 0.05
    bias = jax.random.normal(k3, (C,), dtype=jnp.float32) * 0.01

    w_t, b_p = prepare_classifier_params(weight, bias)   # one-time, persistent
    out = jax.block_until_ready(classifier_forward(x, w_t, b_p, out_features=C))
    ref = x @ weight.T + bias
    assert out.shape == (N, C), out.shape
    assert jnp.allclose(out, ref, atol=1e-5, rtol=1e-5), "f32 mismatch vs reference"

    # --- bf16 compute path (f32 accumulate), same params ---
    w_t_bf, b_p_bf = prepare_classifier_params(weight, bias, compute_dtype=jnp.bfloat16)
    out_bf = jax.block_until_ready(classifier_forward(x, w_t_bf, b_p_bf, out_features=C))
    assert jnp.allclose(out_bf, ref, atol=2e-2, rtol=2e-2), "bf16 mismatch vs reference"

    # --- multiclass head: num_classes=5 -> out_features = 5 ---
    N2, D2, C2 = 16, 32, 5
    x2 = jax.random.normal(k4, (N2, D2), dtype=jnp.float32)
    w2 = jax.random.normal(k5, (C2, D2), dtype=jnp.float32) * 0.05
    b2 = jax.random.normal(k6, (C2,), dtype=jnp.float32) * 0.01
    w2_t, b2_p = prepare_classifier_params(w2, b2)
    out2 = jax.block_until_ready(classifier_forward(x2, w2_t, b2_p, out_features=C2))
    ref2 = x2 @ w2.T + b2
    assert out2.shape == (N2, C2), out2.shape
    assert jnp.allclose(out2, ref2, atol=1e-5, rtol=1e-5), "multiclass mismatch"

    print("KERNEL_OK")
</pallas_src>

<mosaic_0001>
module attributes {stable_mosaic.version = 11 : i64} {
  func.func @_linear_kernel_single_k(%arg0: i32, %arg1: i32, %arg2: memref<8x128xf32, #tpu.memory_space<vmem>>, %arg3: memref<128x128xf32, #tpu.memory_space<vmem>>, %arg4: memref<1x128xf32, #tpu.memory_space<vmem>>, %arg5: memref<8x128xf32, #tpu.memory_space<vmem>>) attributes {dimension_semantics = [#tpu.dimension_semantics<parallel>, #tpu.dimension_semantics<parallel>], iteration_bounds = array<i64: 1, 1>, scalar_prefetch = 0 : i64, scratch_operands = 0 : i64, tpu.core_type = #tpu.core_type<tc>, window_params = [{transform_indices = @transform_0, window_bounds = array<i64: 8, 128>}, {transform_indices = @transform_1, window_bounds = array<i64: 128, 128>}, {transform_indices = @transform_2, window_bounds = array<i64: 1, 128>}, {transform_indices = @transform_3, window_bounds = array<i64: 8, 128>}]} {
    %c0 = arith.constant 0 : index
    %c0_0 = arith.constant 0 : index
    %0 = vector.load %arg2[%c0, %c0_0] : memref<8x128xf32, #tpu.memory_space<vmem>>, vector<8x128xf32>
    %c0_1 = arith.constant 0 : index
    %c0_2 = arith.constant 0 : index
    %1 = vector.load %arg3[%c0_1, %c0_2] : memref<128x128xf32, #tpu.memory_space<vmem>>, vector<128x128xf32>
    %cst = arith.constant dense<0.000000e+00> : vector<8x128xf32>
    %2 = tpu.matmul %0, %1, %cst {dimension_numbers = #tpu.dot_dimension_numbers<[1], [0], [0], [1], [0, 0, 1, 1], [], []>} : vector<8x128xf32>, vector<128x128xf32>, vector<8x128xf32> -> vector<8x128xf32>
    %c0_3 = arith.constant 0 : index
    %c0_4 = arith.constant 0 : index
    %3 = vector.load %arg4[%c0_3, %c0_4] : memref<1x128xf32, #tpu.memory_space<vmem>>, vector<1x128xf32>
    %4 = vector.broadcast %3 : vector<1x128xf32> to vector<8x128xf32>
    %5 = arith.addf %2, %4 : vector<8x128xf32>
    %c0_5 = arith.constant 0 : index
    %c0_6 = arith.constant 0 : index
    %6 = vector.load %arg5[%c0_5, %c0_6] : memref<8x128xf32, #tpu.memory_space<vmem>>, vector<8x128xf32>
    tpu.vector_store %arg5[%c0_5, %c0_6], %5 {strides = array<i32>} : memref<8x128xf32, #tpu.memory_space<vmem>>, vector<8x128xf32>,
    return
  }
  func.func @transform_0(%arg0: i32, %arg1: i32) -> (i32, i32) {
    %c0_i32 = arith.constant 0 : i32
    %c0_i32_0 = arith.constant 0 : i32
    return %arg0, %c0_i32 : i32, i32
  }
  func.func @transform_1(%arg0: i32, %arg1: i32) -> (i32, i32) {
    %c0_i32 = arith.constant 0 : i32
    %c0_i32_0 = arith.constant 0 : i32
    return %c0_i32, %arg1 : i32, i32
  }
  func.func @transform_2(%arg0: i32, %arg1: i32) -> (i32, i32) {
    %c0_i32 = arith.constant 0 : i32
    %c0_i32_0 = arith.constant 0 : i32
    return %c0_i32, %arg1 : i32, i32
  }
  func.func @transform_3(%arg0: i32, %arg1: i32) -> (i32, i32) {
    %c0_i32 = arith.constant 0 : i32
    return %arg0, %arg1 : i32, i32
  }
}

</mosaic_0001>

<llo_original>
// kernel: classifier_forward.1
$region0: #{classifier_forward.1}
  #allocation0 [shape = 'u32[]', space=smem, size = 0x4, offset = 0x4, fixed_abs, tag = 'smem constant byte address 0x4 - core index']
  #allocation1 [shape = 'u32[144,128]{1,0:T(1,128)}', space=vmem, size = 0x12000, scoped, tag = 'internal scratch']
  %s0 = inlined_call_operand.vmem [shape: f32[8,128], index: 0, kind: input, shape index: {}]
  %s1 = inlined_call_operand.hbm [shape: f32[128,128], index: 1, kind: input, shape index: {}]
  %s2 = inlined_call_operand.vmem [shape: f32[1,128], index: 2, kind: input, shape index: {}]
  %s3 = inlined_call_operand.vmem [shape: f32[8,128], index: 3, kind: output, shape index: {}]
  %s4 = sld [smem:[#allocation0]]
  $region26: #{classifier_forward.1} parent=0
    _
  %s6 = ssub.s32 1, %s4
  %s7 = scalar_select 0, %s6, %s4
  $region1: #{classifier_forward.1} parent=0
    #allocation2 [shape = 'u8[65536]{0}', space=vmem, size = 0x10000, scoped, tag = 'input window, operand 1, single buffered']
    #allocation3 [shape = 's32[1]{0}', space=sflag, size = 0x4, scoped, tag = 'scoped memory for classifier_forward.1']
    %8 = vsyncpa [#allocation3], 0
    // Predicated region
    $region2: #{classifier_forward.1} parent=1 // pred_check
      _
    $region3: #{classifier_forward.1} parent=1 // pred_check_branch
      %10 = sbr.rel (0) target = $region5
    $region4: #{classifier_forward.1} parent=1 // pred_region
      _
    $region5: #{classifier_forward.1} parent=1 // pred_fallthru
      _
    // Predicated region
    $region6: #{classifier_forward.1} parent=1 // pred_check
      _
    $region7: #{classifier_forward.1} parent=1 // pred_check_branch
      %12 = sbr.rel (0) target = $region9
    $region8: #{classifier_forward.1} parent=1 // pred_region
      %s14 = ssub.s32 2048, 2048
      %15 = vsyncadd [#allocation3], %s14
      %s16 = sshll.u32 [#allocation2], 4
      %s17 = int_to_ptr.vmem [resolvable:$true] %s16
      %22 = dma.hbm_to_vmem [thread:$0]  %s1, 2048, %s17, [#allocation3], 128, 128, 8
    $region9: #{classifier_forward.1} parent=1 // pred_fallthru
      _
    // Predicated region
    $region10: #{classifier_forward.1} parent=1 // pred_check
      _
    $region11: #{classifier_forward.1} parent=1 // pred_check_branch
      %24 = sbr.rel (0) target = $region13
    $region12: #{classifier_forward.1} parent=1 // pred_region
      _
    $region13: #{classifier_forward.1} parent=1 // pred_fallthru
      _
    // Predicated region
    $region14: #{classifier_forward.1} parent=1 // pred_check
      _
    $region15: #{classifier_forward.1} parent=1 // pred_check_branch
      %26 = sbr.rel (0) target = $region17
    $region16: #{classifier_forward.1} parent=1 // pred_region
      %27 = dma.done [#allocation3], 2048
    $region17: #{classifier_forward.1} parent=1 // pred_fallthru
      _
    %v28 = vld [vmem:[%s0] sm:$0xff]
    %v29 = vld [vmem:[#allocation2] sm:$0xff]
    %v30 = vld [vmem:[#allocation2 + $0x8] sm:$0xff]
    %v31 = vld [vmem:[#allocation2 + $0x10] sm:$0xff]
    %v32 = vld [vmem:[#allocation2 + $0x18] sm:$0xff]
    %v33 = vld [vmem:[#allocation2 + $0x20] sm:$0xff]
    %v34 = vld [vmem:[#allocation2 + $0x28] sm:$0xff]
    %v35 = vld [vmem:[#allocation2 + $0x30] sm:$0xff]
    %v36 = vld [vmem:[#allocation2 + $0x38] sm:$0xff]
    %v37 = vld [vmem:[#allocation2 + $0x40] sm:$0xff]
    %v38 = vld [vmem:[#allocation2 + $0x48] sm:$0xff]
    %v39 = vld [vmem:[#allocation2 + $0x50] sm:$0xff]
    %v40 = vld [vmem:[#allocation2 + $0x58] sm:$0xff]
    %v41 = vld [vmem:[#allocation2 + $0x60] sm:$0xff]
    %v42 = vld [vmem:[#allocation2 + $0x68] sm:$0xff]
    %v43 = vld [vmem:[#allocation2 + $0x70] sm:$0xff]
    %v44 = vld [vmem:[#allocation2 + $0x78] sm:$0xff]
    %v45 = vld [vmem:[%s2] sm:$0x1]
    %v47 = vlaneseq
    %v48 = vshrl.u32 %v47, 7
    %v49 = vsub.s32 0, %v48
    %v50 = vrot.slane %v45, %v49
    %52 = vmatprep.subr.mxu0 0.0
    %53 = vmatpush1.msra.mxu0 %v29
    %54 = vmatprep.subr.mxu0 0.0
    %55 = vmatpush1.msra.mxu0 %v30
    %56 = vmatprep.subr.mxu0 0.0
    %57 = vmatpush1.msra.mxu0 %v31
    %58 = vmatprep.subr.mxu0 0.0
    %59 = vmatpush1.msra.mxu0 %v32
    %60 = vmatprep.subr.mxu0 0.0
    %61 = vmatpush1.msra.mxu0 %v33
    %62 = vmatprep.subr.mxu0 0.0
    %63 = vmatpush1.msra.mxu0 %v34
    %64 = vmatprep.subr.mxu0 0.0
    %65 = vmatpush1.msra.mxu0 %v35
    %66 = vmatprep.subr.mxu0 0.0
    %67 = vmatpush1.msra.mxu0 %v36
    %68 = vmatprep.subr.mxu0 0.0
    %69 = vmatpush1.msra.mxu0 %v37
    %70 = vmatprep.subr.mxu0 0.0
    %71 = vmatpush1.msra.mxu0 %v38
    %72 = vmatprep.subr.mxu0 0.0
    %73 = vmatpush1.msra.mxu0 %v39
    %74 = vmatprep.subr.mxu0 0.0
    %75 = vmatpush1.msra.mxu0 %v40
    %76 = vmatprep.subr.mxu0 0.0
    %77 = vmatpush1.msra.mxu0 %v41
    %78 = vmatprep.subr.mxu0 0.0
    %79 = vmatpush1.msra.mxu0 %v42
    %80 = vmatprep.subr.mxu0 0.0
    %81 = vmatpush1.msra.mxu0 %v43
    %82 = vmatprep.subr.mxu0 0.0
    %83 = vmatpush1.msra.mxu0 %v44
    %84 = vmatprep.subr.mxu0 0.0
    %85 = vmatpush1.msra.mxu0 0.0
    %86 = vmatprep.subr.mxu0 0.0
    %87 = vmatpush1.msra.mxu0 0.0
    %88 = vmatprep.subr.mxu0 0.0
    %89 = vmatpush1.msra.mxu0 0.0
    %90 = vmatprep.subr.mxu0 0.0
    %91 = vmatpush1.msra.mxu0 0.0
    %92 = vmatprep.subr.mxu0 0.0
    %93 = vmatpush1.msra.mxu0 0.0
    %94 = vmatprep.subr.mxu0 0.0
    %95 = vmatpush1.msra.mxu0 0.0
    %96 = vmatprep.subr.mxu0 0.0
    %97 = vmatpush1.msra.mxu0 0.0
    %98 = vmatprep.subr.mxu0 0.0
    %99 = vmatpush1.msra.mxu0 0.0
    %100 = vmatprep.subr.mxu0 0.0
    %101 = vmatpush1.msra.mxu0 0.0
    %102 = vmatprep.subr.mxu0 0.0
    %103 = vmatpush1.msra.mxu0 0.0
    %104 = vmatprep.subr.mxu0 0.0
    %105 = vmatpush1.msra.mxu0 0.0
    %106 = vmatprep.subr.mxu0 0.0
    %107 = vmatpush1.msra.mxu0 0.0
    %108 = vmatprep.subr.mxu0 0.0
    %109 = vmatpush1.msra.mxu0 0.0
    %110 = vmatprep.subr.mxu0 0.0
    %111 = vmatpush1.msra.mxu0 0.0
    %112 = vmatprep.subr.mxu0 0.0
    %113 = vmatpush1.msra.mxu0 0.0
    %114 = vmatprep.subr.mxu0 0.0
    %115 = vmatpush1.msra.mxu0 0.0
    %116 = vmatprep.mubr.f32.mxu0 0.0
    %117 = vmatmul.mubr.f32.gmra.mrb[0].mxu0 %v28
    %v118 = vpop.f32.mrb[0].mxu0
    %v119 = vadd.f32 %v50, %v118
    %v120 = vpop.f32.mrb[0].mxu0
    %121 = vdwg.mxu0
    %122 = vst [vmem:[%s3] sm:$0xff] %v119
    // Predicated region
    $region18: #{classifier_forward.1} parent=1 // pred_check
      _
    $region19: #{classifier_forward.1} parent=1 // pred_check_branch
      %124 = sbr.rel (0) target = $region21
    $region20: #{classifier_forward.1} parent=1 // pred_region
      _
    $region21: #{classifier_forward.1} parent=1 // pred_fallthru
      _
    // Predicated region
    $region22: #{classifier_forward.1} parent=1 // pred_check
      _
    $region23: #{classifier_forward.1} parent=1 // pred_check_branch
      %126 = sbr.rel (0) target = $region25
    $region24: #{classifier_forward.1} parent=1 // pred_region
      _
    $region25: #{classifier_forward.1} parent=1 // pred_fallthru
      _
    %127 = vsyncpa [#allocation3], 1

</llo_original>
